<compile_context>
chip_gen: v7x
topology: tpu7x:2x2x1
jax: 0.10.0
libtpu: 0.0.40
codegen_flags: <defaults>
</compile_context>

<pallas_src>
import functools

import jax
import jax.numpy as jnp
from jax.experimental import pallas as pl
from jax.experimental.pallas import tpu as pltpu


def _round_up(v, m):
    return (v + m - 1) // m * m


def _cdiv(a, b):
    return -(-a // b)


def _vmem_budget_bytes():
    """~70% of physical VMEM (v7x: 64 MiB/TC -> ~44.8 MiB; v5e/v6e: 128 MiB)."""
    try:
        cap = int(pltpu.get_tpu_info().vmem_capacity_bytes)
    except Exception:
        cap = 64 * 1024 * 1024  # conservative fallback, safe on every generation
    return int(cap * 0.70)


def _vmem_need(tm, tk, hidden_p, x_isz, w_isz, single_k):
    """Rough per-grid-step VMEM working-set estimate (conservative)."""
    need = 2 * tm * tk * x_isz            # double-buffered x tile
    need += 2 * tk * hidden_p * w_isz     # W1 tile (counted x2 to stay safe)
    need += 2 * 8 * hidden_p * 4          # b1/gw2 slab
    need += 2 * tm * 4                    # output tile
    need += 3 * tm * hidden_p * 4         # f32 epilogue intermediates (folded)
    if not single_k:
        need += tm * hidden_p * 4         # f32 accumulator scratch
    return need + (1 << 16)               # misc headroom


def _cls_prediction_kernel(x_ref, w1_ref, slab_ref, consts_ref, o_ref, *scratch,
                           eps, hidden_true, single_k):
    """One (row-tile i, k-tile k) grid step.

    x_ref:      (TM, TK)       input rows (matmul dtype)
    w1_ref:     (TK, Hp)       W1^T slice (matmul dtype)
    slab_ref:   (8, Hp) f32    row 0: b1, row 1: gw2 = gamma*w2 (padded cols 0)
    consts_ref: (2,)  f32 SMEM [sum(gw2), c0 = sum(beta*w2) + b2]
    o_ref:      (1, 1, TM)     lane-dense per-row outputs
    scratch:    ((TM, Hp) f32 accumulator,) iff K is tiled
    """

    def epilogue(h32):
        b1 = slab_ref[0:1, :]                      # (1, Hp)
        gw2 = slab_ref[1:2, :]                     # (1, Hp)
        h = jnp.maximum(h32 + b1, 0.0)             # ReLU; padded cols stay exactly 0

        # BertLayerNorm affine + Linear(hidden, 1), folded:
        #   out = inv_std * (sum(h*gw2) - mu*sum(gw2)) + c0
        # Padded hidden columns hold exact zeros (zero W1/x padding, zero b1 /
        # gw2 padding), so plain sums over the padded row equal sums over the
        # true hidden columns.
        inv_h = 1.0 / float(hidden_true)
        s1 = jnp.sum(h, axis=-1)                   # (TM,)
        s2 = jnp.sum(h * h, axis=-1)               # (TM,)
        sgw = jnp.sum(h * gw2, axis=-1)            # (TM,)
        mu = s1 * inv_h
        var = jnp.maximum(s2 * inv_h - mu * mu, 0.0)   # clamp f32 cancellation
        inv_std = jax.lax.rsqrt(var + eps)         # EUP
        out = inv_std * (sgw - mu * consts_ref[0]) + consts_ref[1]
        o_ref[...] = out.reshape(1, 1, -1).astype(o_ref.dtype)

    if single_k:
        # Whole (padded) K in one MXU matmul; W1 stays VMEM-resident per call.
        epilogue(jnp.dot(x_ref[...], w1_ref[...],
                         preferred_element_type=jnp.float32))
    else:
        (acc_ref,) = scratch
        k = pl.program_id(1)

        @pl.when(k == 0)
        def _init():
            acc_ref[...] = jnp.zeros_like(acc_ref)

        acc_ref[...] += jnp.dot(x_ref[...], w1_ref[...],
                                preferred_element_type=jnp.float32)

        @pl.when(k == pl.num_programs(1) - 1)
        def _finalize():
            epilogue(acc_ref[...])


def make_cls_prediction(params, *, eps=1e-12, tile_rows=256, matmul_dtype=None,
                        k_tile_limit=None):
    """Prepare (transpose/pad/fold) the weights ONCE and return forward(x).

    matmul_dtype=jnp.bfloat16 casts the Linear1 operands for bf16-native MXUs
    (v6e/v7x) -- opt-in because it changes first-matmul numerics.
    """
    w1, b1, gamma, beta, w2, b2 = params
    hidden, d_in = w1.shape

    mm_dtype = jnp.dtype(matmul_dtype) if matmul_dtype is not None else jnp.dtype(w1.dtype)
    x_isz = mm_dtype.itemsize
    w_isz = mm_dtype.itemsize

    hidden_p = _round_up(hidden, 128)
    d_in_128 = _round_up(d_in, 128)
    blocks = d_in_128 // 128
    blocks_cap = blocks if k_tile_limit is None else max(1, min(blocks, k_tile_limit // 128))

    budget = _vmem_budget_bytes()

    # --- static tile planning (shape/dtype-only) --------------------------
    single_k = False
    tile_k = d_in_128
    num_k = 1
    tm_plan = max(8, _round_up(tile_rows, 8))
    if blocks_cap >= blocks:
        # Prefer keeping all of W1 resident in VMEM: it is then DMA'd from HBM
        # exactly once for the whole call instead of once per row tile.
        for tm_c in (tm_plan, 128, 64, 32):
            tm_c = max(8, min(tm_c, tm_plan))
            if _vmem_need(tm_c, d_in_128, hidden_p, x_isz, w_isz, True) <= budget:
                tm_plan, single_k = tm_c, True
                break
    if not single_k:
        # K-tiling needed (or forced): bigger row tiles so W1 is re-streamed
        # from HBM fewer times, then minimize K padding.
        # (pl.Buffered(3) on the W1 spec is a further option on v5e.)
        tm_plan = 8
        for tm_c in (max(tile_rows, 512), 384, 256, 192, 128, 64, 32, 16, 8):
            if _vmem_need(tm_c, 128, hidden_p, x_isz, w_isz, False) <= budget:
                tm_plan = tm_c
                break
        max_b = 1
        for b in range(blocks_cap, 0, -1):
            if _vmem_need(tm_plan, b * 128, hidden_p, x_isz, w_isz, False) <= budget:
                max_b = b
                break
        best = None
        for n in range(_cdiv(blocks, max_b), blocks + 1):
            tb = _cdiv(blocks, n)
            pad = tb * n - blocks
            if best is None or pad < best[2]:
                best = (n, tb, pad)
            if pad == 0:
                break
        num_k, tb, _ = best
        tile_k = tb * 128
    d_in_p = tile_k * num_k

    # --- weight prep (paid once here, NOT per forward call) ---------------
    w2f = w2.reshape(-1).astype(jnp.float32)
    gw2 = gamma.astype(jnp.float32) * w2f
    w1t = jnp.zeros((d_in_p, hidden_p), mm_dtype).at[:d_in, :hidden].set(
        w1.T.astype(mm_dtype))
    slab = jnp.zeros((8, hidden_p), jnp.float32)
    slab = slab.at[0, :hidden].set(b1.astype(jnp.float32))
    slab = slab.at[1, :hidden].set(gw2)
    c0 = jnp.sum(beta.astype(jnp.float32) * w2f) + b2.reshape(()).astype(jnp.float32)
    consts = jnp.stack([jnp.sum(gw2), c0]).astype(jnp.float32)

    kernel = functools.partial(_cls_prediction_kernel, eps=eps,
                               hidden_true=hidden, single_k=single_k)

    def forward(x):
        assert x.shape[-1] == d_in, (x.shape, d_in)
        lead = x.shape[:-1]
        out_dtype = x.dtype
        x2d = x.reshape(-1, d_in)
        rows = x2d.shape[0]

        # Row tile: as large as planned, but keep >= 2 row tiles for mid-sized
        # batches so both v7x TensorCores get work (negligible cost elsewhere).
        tm = max(8, min(tm_plan, _round_up(rows, 8)))
        if rows > 8 and (tm // 2) < rows <= tm:
            tm = _round_up(_cdiv(rows, 2), 8)
        rows_p = _round_up(rows, tm)
        n_row_tiles = rows_p // tm

        # Pad only when actually needed (aligned case: no extra activation copy).
        xp = x2d
        if rows_p != rows or d_in_p != d_in:
            xp = jnp.pad(x2d, ((0, rows_p - rows), (0, d_in_p - d_in)))
        if xp.dtype != mm_dtype:
            xp = xp.astype(mm_dtype)

        scratch = [] if single_k else [pltpu.VMEM((tm, hidden_p), jnp.float32)]
        w1_passes = 1 if single_k else n_row_tiles
        cost = pl.CostEstimate(
            flops=int(2 * rows_p * d_in_p * hidden_p + 8 * rows_p * hidden_p),
            transcendentals=int(rows_p),
            bytes_accessed=int(rows_p * d_in_p * x_isz
                               + w1_passes * d_in_p * hidden_p * w_isz
                               + 8 * hidden_p * 4
                               + rows_p * jnp.dtype(out_dtype).itemsize))

        out = pl.pallas_call(
            kernel,
            out_shape=jax.ShapeDtypeStruct((n_row_tiles, 1, tm), out_dtype),
            grid_spec=pltpu.PrefetchScalarGridSpec(
                num_scalar_prefetch=0,
                grid=(n_row_tiles, num_k),
                in_specs=[
                    pl.BlockSpec((tm, tile_k), lambda i, k: (i, k)),        # x
                    pl.BlockSpec((tile_k, hidden_p), lambda i, k: (k, 0)),  # W1^T
                    pl.BlockSpec((8, hidden_p), lambda i, k: (0, 0)),       # b1/gw2
                    pl.BlockSpec(memory_space=pltpu.MemorySpace.SMEM),      # scalars
                ],
                out_specs=pl.BlockSpec((1, 1, tm), lambda i, k: (i, 0, 0)),
                scratch_shapes=scratch),
            compiler_params=pltpu.CompilerParams(
                dimension_semantics=("parallel", "arbitrary"),
                vmem_limit_bytes=int(budget)),
            cost_estimate=cost,
        )(xp, w1t, slab, consts)

        out_flat = out.reshape(rows_p)[:rows]
        return out_flat.reshape(*lead, 1)

    return forward


def cls_prediction(x, params, **kwargs):
    """Convenience one-shot wrapper (weight prep redone per call; prefer
    make_cls_prediction(...) when calling repeatedly)."""
    return make_cls_prediction(params, **kwargs)(x)


def init_params(key, input_size, hidden_size, dtype=jnp.float32):
    """Deterministic synthetic parameters matching the PyTorch module shapes."""
    k1, k2, k3, k4, k5, k6 = jax.random.split(key, 6)
    w1 = jax.random.normal(k1, (hidden_size, input_size), dtype) * 0.05
    b1 = jax.random.normal(k2, (hidden_size,), dtype) * 0.01
    gamma = 1.0 + 0.1 * jax.random.normal(k3, (hidden_size,), dtype)
    beta = 0.05 * jax.random.normal(k4, (hidden_size,), dtype)
    w2 = jax.random.normal(k5, (1, hidden_size), dtype) * 0.05
    b2 = jax.random.normal(k6, (1,), dtype) * 0.01
    return (w1, b1, gamma, beta, w2, b2)


def reference(x, params, eps=1e-12):
    """Pure-JAX reference (Linear -> ReLU -> BertLayerNorm -> Linear(.,1))."""
    w1, b1, gamma, beta, w2, b2 = params
    h = x @ w1.T + b1
    h = jnp.maximum(h, 0.0)
    mu = jnp.mean(h, axis=-1, keepdims=True)
    var = jnp.mean((h - mu) ** 2, axis=-1, keepdims=True)
    hn = (h - mu) * jax.lax.rsqrt(var + eps) * gamma + beta
    return jnp.sum(hn * w2.reshape(-1), axis=-1, keepdims=True) + b2


if __name__ == "__main__":
    key = jax.random.PRNGKey(0)
    k1, k2, k3, k4, k5, k6 = jax.random.split(key, 6)

    # Case 1: module defaults (input_size == hidden_size), tiny shapes.
    batch, seq, hidden = 2, 8, 32
    x1 = jax.random.normal(k1, (batch, seq, hidden), jnp.float32)
    p1 = init_params(k2, hidden, hidden)
    fwd1 = make_cls_prediction(p1)          # weight prep hoisted out of forward
    out1 = jax.block_until_ready(fwd1(x1))
    ref1 = reference(x1, p1)
    assert out1.shape == (batch, seq, 1), out1.shape
    assert jnp.allclose(out1, ref1, atol=1e-4, rtol=1e-4), (
        float(jnp.max(jnp.abs(out1 - ref1))))

    # Case 2: ragged row count + non-128 feature dims (input_size != hidden)
    # -> exercises row/feature padding, padded-column LN handling and the
    # multi-row-tile lane-dense output path.
    batch2, seq2, hidden2, d_in2 = 3, 100, 48, 80
    x2 = jax.random.normal(k3, (batch2, seq2, d_in2), jnp.float32)
    p2 = init_params(k4, d_in2, hidden2)
    out2 = jax.block_until_ready(cls_prediction(x2, p2))
    ref2 = reference(x2, p2)
    assert out2.shape == (batch2, seq2, 1), out2.shape
    assert jnp.allclose(out2, ref2, atol=1e-4, rtol=1e-4), (
        float(jnp.max(jnp.abs(out2 - ref2))))

    # Case 3: force the K-tiled path (k_tile_limit) to exercise the f32 VMEM
    # accumulator with pl.when init/finalize on a (2, 2) grid.
    batch3, seq3, hidden3, d_in3 = 2, 24, 128, 256
    x3 = jax.random.normal(k5, (batch3, seq3, d_in3), jnp.float32)
    p3 = init_params(k6, d_in3, hidden3)
    out3 = jax.block_until_ready(cls_prediction(x3, p3, k_tile_limit=128))
    ref3 = reference(x3, p3)
    assert out3.shape == (batch3, seq3, 1), out3.shape
    assert jnp.allclose(out3, ref3, atol=1e-4, rtol=1e-4), (
        float(jnp.max(jnp.abs(out3 - ref3))))

    print("KERNEL_OK")
</pallas_src>

<mosaic_0001>
module attributes {stable_mosaic.version = 11 : i64} {
  func.func @_cls_prediction_kernel(%arg0: i32, %arg1: i32, %arg2: memref<8x128xf32, #tpu.memory_space<vmem>>, %arg3: memref<128x128xf32, #tpu.memory_space<vmem>>, %arg4: memref<8x128xf32, #tpu.memory_space<vmem>>, %arg5: memref<2xf32, #tpu.memory_space<smem>>, %arg6: memref<1x1x8xf32, #tpu.memory_space<vmem>>) attributes {dimension_semantics = [#tpu.dimension_semantics<parallel>, #tpu.dimension_semantics<arbitrary>], iteration_bounds = array<i64: 2, 1>, scalar_prefetch = 0 : i64, scratch_operands = 0 : i64, tpu.core_type = #tpu.core_type<tc>, window_params = [{transform_indices = @transform_0, window_bounds = array<i64: 8, 128>}, {transform_indices = @transform_1, window_bounds = array<i64: 128, 128>}, {pipeline_mode = #tpu.pipeline_mode<synchronous>, transform_indices = @transform_2, window_bounds = array<i64: 8, 128>}, {transform_indices = @transform_3, window_bounds = array<i64: 2>}, {transform_indices = @transform_4, window_bounds = array<i64: 1, 1, 8>}]} {
    %c0 = arith.constant 0 : index
    %c0_0 = arith.constant 0 : index
    %0 = vector.load %arg2[%c0, %c0_0] : memref<8x128xf32, #tpu.memory_space<vmem>>, vector<8x128xf32>
    %c0_1 = arith.constant 0 : index
    %c0_2 = arith.constant 0 : index
    %1 = vector.load %arg3[%c0_1, %c0_2] : memref<128x128xf32, #tpu.memory_space<vmem>>, vector<128x128xf32>
    %cst = arith.constant dense<0.000000e+00> : vector<8x128xf32>
    %2 = tpu.matmul %0, %1, %cst {dimension_numbers = #tpu.dot_dimension_numbers<[1], [0], [0], [1], [0, 0, 1, 1], [], []>} : vector<8x128xf32>, vector<128x128xf32>, vector<8x128xf32> -> vector<8x128xf32>
    %c0_3 = arith.constant 0 : index
    %c0_4 = arith.constant 0 : index
    %3 = vector.load %arg4[%c0_3, %c0_4] : memref<8x128xf32, #tpu.memory_space<vmem>>, vector<1x128xf32>
    %c1 = arith.constant 1 : index
    %c0_5 = arith.constant 0 : index
    %4 = vector.load %arg4[%c1, %c0_5] : memref<8x128xf32, #tpu.memory_space<vmem>>, vector<1x128xf32>
    %5 = vector.broadcast %3 : vector<1x128xf32> to vector<8x128xf32>
    %6 = arith.addf %2, %5 : vector<8x128xf32>
    %cst_6 = arith.constant 0.000000e+00 : f32
    %7 = vector.broadcast %cst_6 : f32 to vector<8x128xf32>
    %8 = arith.maximumf %6, %7 : vector<8x128xf32>
    %cst_7 = arith.constant dense<0.000000e+00> : vector<8xf32>
    %9 = vector.multi_reduction <add>, %8, %cst_7 [1] : vector<8x128xf32> to vector<8xf32>
    %10 = arith.mulf %8, %8 : vector<8x128xf32>
    %cst_8 = arith.constant dense<0.000000e+00> : vector<8xf32>
    %11 = vector.multi_reduction <add>, %10, %cst_8 [1] : vector<8x128xf32> to vector<8xf32>
    %12 = vector.broadcast %4 : vector<1x128xf32> to vector<8x128xf32>
    %13 = arith.mulf %8, %12 : vector<8x128xf32>
    %cst_9 = arith.constant dense<0.000000e+00> : vector<8xf32>
    %14 = vector.multi_reduction <add>, %13, %cst_9 [1] : vector<8x128xf32> to vector<8xf32>
    %cst_10 = arith.constant 3.125000e-02 : f32
    %15 = vector.broadcast %cst_10 : f32 to vector<8xf32>
    %16 = arith.mulf %9, %15 : vector<8xf32>
    %cst_11 = arith.constant 3.125000e-02 : f32
    %17 = vector.broadcast %cst_11 : f32 to vector<8xf32>
    %18 = arith.mulf %11, %17 : vector<8xf32>
    %19 = arith.mulf %16, %16 : vector<8xf32>
    %20 = arith.subf %18, %19 : vector<8xf32>
    %cst_12 = arith.constant 0.000000e+00 : f32
    %21 = vector.broadcast %cst_12 : f32 to vector<8xf32>
    %22 = arith.maximumf %20, %21 : vector<8xf32>
    %cst_13 = arith.constant 9.99999996E-13 : f32
    %23 = vector.broadcast %cst_13 : f32 to vector<8xf32>
    %24 = arith.addf %22, %23 : vector<8xf32>
    %25 = math.rsqrt %24 : vector<8xf32>
    %c0_14 = arith.constant 0 : index
    %26 = memref.load %arg5[%c0_14] : memref<2xf32, #tpu.memory_space<smem>>
    %27 = vector.broadcast %26 : f32 to vector<8xf32>
    %28 = arith.mulf %16, %27 : vector<8xf32>
    %29 = arith.subf %14, %28 : vector<8xf32>
    %30 = arith.mulf %25, %29 : vector<8xf32>
    %c1_15 = arith.constant 1 : index
    %31 = memref.load %arg5[%c1_15] : memref<2xf32, #tpu.memory_space<smem>>
    %32 = vector.broadcast %31 : f32 to vector<8xf32>
    %33 = arith.addf %30, %32 : vector<8xf32>
    %34 = vector.shape_cast %33 : vector<8xf32> to vector<1x1x8xf32>
    %c0_16 = arith.constant 0 : index
    %c0_17 = arith.constant 0 : index
    %c0_18 = arith.constant 0 : index
    %35 = vector.load %arg6[%c0_16, %c0_17, %c0_18] : memref<1x1x8xf32, #tpu.memory_space<vmem>>, vector<1x1x8xf32>
    tpu.vector_store %arg6[%c0_16, %c0_17, %c0_18], %34 {strides = array<i32>} : memref<1x1x8xf32, #tpu.memory_space<vmem>>, vector<1x1x8xf32>,
    return
  }
  func.func @transform_0(%arg0: i32, %arg1: i32) -> (i32, i32) {
    %c0_i32 = arith.constant 0 : i32
    return %arg0, %arg1 : i32, i32
  }
  func.func @transform_1(%arg0: i32, %arg1: i32) -> (i32, i32) {
    %c0_i32 = arith.constant 0 : i32
    %c0_i32_0 = arith.constant 0 : i32
    return %arg1, %c0_i32 : i32, i32
  }
  func.func @transform_2(%arg0: i32, %arg1: i32) -> (i32, i32) {
    %c0_i32 = arith.constant 0 : i32
    %c0_i32_0 = arith.constant 0 : i32
    %c0_i32_1 = arith.constant 0 : i32
    return %c0_i32, %c0_i32_0 : i32, i32
  }
  func.func @transform_3(%arg0: i32, %arg1: i32) -> i32 {
    %c0_i32 = arith.constant 0 : i32
    %c0_i32_0 = arith.constant 0 : i32
    return %c0_i32 : i32
  }
  func.func @transform_4(%arg0: i32, %arg1: i32) -> (i32, i32, i32) {
    %c0_i32 = arith.constant 0 : i32
    %c0_i32_0 = arith.constant 0 : i32
    %c0_i32_1 = arith.constant 0 : i32
    return %arg0, %c0_i32, %c0_i32_0 : i32, i32, i32
  }
}

</mosaic_0001>

<llo_original>
// kernel: tpu_custom_call.1
$region0: #{tpu_custom_call.1}
  #allocation0 [shape = 'u32[]', space=smem, size = 0x4, offset = 0x4, fixed_abs, tag = 'smem constant byte address 0x4 - core index']
  #allocation1 [shape = 'u32[144,128]{1,0:T(1,128)}', space=vmem, size = 0x12000, scoped, tag = 'internal scratch']
  %s0 = inlined_call_operand.hbm [shape: f32[16,128], index: 0, kind: input, shape index: {}]
  %s1 = inlined_call_operand.hbm [shape: f32[128,128], index: 1, kind: input, shape index: {}]
  %s2 = inlined_call_operand.hbm [shape: f32[8,128], index: 2, kind: input, shape index: {}]
  %s3 = inlined_call_operand.vmem [shape: f32[2], index: 3, kind: input, shape index: {}]
  %s4 = inlined_call_operand.hbm [shape: f32[2,1,8], index: 4, kind: output, shape index: {}]
  %s5 = sld [smem:[#allocation0]]
  $region65: #{tpu_custom_call.1} parent=0
    _
  %s7 = ssub.s32 1, %s5
  %s8 = scalar_select 0, %s7, %s5
  $region1: #{tpu_custom_call.1} parent=0
    #allocation2 [shape = 'u8[8192]{0}', space=vmem, size = 0x2000, scoped, tag = 'input window, operand 0']
    #allocation3 [shape = 's32[2]{0}', space=sflag, size = 0x8, scoped, tag = 'scoped memory for tpu_custom_call.1']
    #allocation4 [shape = 's32[2]{0}', space=sflag, size = 0x8, scoped, tag = 'scoped memory for tpu_custom_call.1']
    #allocation5 [shape = 's32[2]{0}', space=sflag, size = 0x8, scoped, tag = 'scoped memory for tpu_custom_call.1']
    #allocation6 [shape = 'u8[65536]{0}', space=vmem, size = 0x10000, scoped, tag = 'input window, operand 1, single buffered']
    #allocation7 [shape = 's32[1]{0}', space=sflag, size = 0x4, scoped, tag = 'scoped memory for tpu_custom_call.1']
    #allocation8 [shape = 'u8[4096]{0}', space=vmem, size = 0x1000, scoped, tag = 'input window, operand 2, single buffered']
    #allocation9 [shape = 'u8[512]{0}', space=smem, size = 0x200, scoped, tag = 'input window, operand 3, single buffered']
    #allocation10 [shape = 'u8[1024]{0}', space=vmem, size = 0x400, scoped, tag = 'output window, operand 0']
    %9 = vsyncpa [#allocation3], 0
    %s10 = scalar_lea.sflag [#allocation3], 1
    %11 = vsyncpa %s10, 0
    %12 = vsyncpa [#allocation7], 0
    %13 = vsyncpa [#allocation5], 0
    %14 = vsyncpa [#allocation4], 0
    %s15 = scalar_lea.sflag [#allocation4], 1
    %16 = vsyncpa %s15, 0
    loop: start=0, step=1, limit=4
    $region2: #{tpu_custom_call.1} parent=1 // loop_pre_header
      _
    $region3: #{tpu_custom_call.1} parent=1 // loop_header
      %s18 = sphi 0, %s22
      %p19 = scmp.ge.s32.totalorder %s18, 4
      %s25 = sphi 0, %s37
      %s26 = sphi 0, %s33
      %s27 = sphi 0, %s25
      %s28 = sphi 0, %s26
      %s29 = sphi 0, %s27
      %s30 = sphi 0, %s28
      %s42 = sphi 0, %s44
      %s45 = sphi 0, %s42
      %s46 = sphi 0, %s45
      %s62 = sphi 0, %s46
      %s68 = sphi 0, %s70
      %s71 = sphi 0, %s68
      %s72 = sphi 0, %s71
      %s88 = sphi 0, %s72
      %s92 = sphi 0, %s92
      %s94 = sphi 0, %s92
      %s95 = sphi 0, %s94
      %s109 = sphi 0, %s95
      %s113 = sphi 0, %s113
      %s115 = sphi 0, %s113
      %s116 = sphi 0, %s115
      %s130 = sphi 0, %s116
      %s136 = sphi 0, %s138
      %s139 = sphi 0, %s136
      %s140 = sphi 0, %s139
      %s156 = sphi 0, %s140
    $region4: #{tpu_custom_call.1} parent=1 // loop_header_branch
      %21 = sbr.rel (%p19) target = $region8
    $region5: #{tpu_custom_call.1} parent=1 // loop_body
      %s23 = ssub.s32 %s18, 1
      %s24 = ssub.s32 %s18, 2
      %s31 = sadd.s32 1, %s26
      %p32 = scmp.ge.s32.totalorder %s31, 1
      %s33 = scalar_select %p32, 0, %s31
      %s34 = sadd.s32 1, %s25
      %s35 = scalar_select %p32, %s34, %s25
      %p36 = scmp.ge.s32.totalorder %s35, 2
      %s37 = scalar_select %p36, 0, %s35
      %s38 = ssub.s32 %s25, %s37
      %s39 = ssub.s32 %s26, %s33
      %s40 = sor.u32 %s38, %s39
      %p41 = scmp.eq.s32.totalorder %s40, 0
      %s43 = sadd.s32 %s42, 1
      %s44 = scalar_select %p41, %s42, %s43
      %p47 = pneg %p41
      %p48 = scmp.eq.s32.totalorder %s18, 1
      %p49 = por %p47, %p48
      %p50 = scmp.ne.s32.totalorder %s42, %s45
      %p51 = scmp.eq.s32.totalorder %s18, 0
      %p52 = por %p50, %p51
      %p53 = scmp.ne.s32.totalorder %s42, %s45
      %p54 = scmp.eq.s32.totalorder %s23, 1
      %p55 = por %p53, %p54
      %p56 = scmp.ne.s32.totalorder %s45, %s46
      %p57 = scmp.eq.s32.totalorder %s23, 0
      %p58 = por %p56, %p57
      %p59 = scmp.ne.s32.totalorder %s45, %s46
      %p60 = scmp.eq.s32.totalorder %s24, 1
      %p61 = por %p59, %p60
      %p63 = scmp.ne.s32.totalorder %s46, %s62
      %p64 = scmp.eq.s32.totalorder %s24, 0
      %p65 = por %p63, %p64
      %s66 = ssub.s32 %s26, %s33
      %p67 = scmp.eq.s32.totalorder %s66, 0
      %s69 = sadd.s32 %s68, 1
      %s70 = scalar_select %p67, %s68, %s69
      %p73 = pneg %p67
      %p74 = scmp.eq.s32.totalorder %s18, 1
      %p75 = por %p73, %p74
      %p76 = scmp.ne.s32.totalorder %s68, %s71
      %p77 = scmp.eq.s32.totalorder %s18, 0
      %p78 = por %p76, %p77
      %p79 = scmp.ne.s32.totalorder %s68, %s71
      %p80 = scmp.eq.s32.totalorder %s23, 1
      %p81 = por %p79, %p80
      %p82 = scmp.ne.s32.totalorder %s71, %s72
      %p83 = scmp.eq.s32.totalorder %s23, 0
      %p84 = por %p82, %p83
      %p85 = scmp.ne.s32.totalorder %s71, %s72
      %p86 = scmp.eq.s32.totalorder %s24, 1
      %p87 = por %p85, %p86
      %p89 = scmp.ne.s32.totalorder %s72, %s88
      %p90 = scmp.eq.s32.totalorder %s24, 0
      %p91 = por %p89, %p90
      %s93 = sadd.s32 %s92, 1
      %p96 = scmp.eq.s32.totalorder %s18, 1
      %p97 = scmp.ne.s32.totalorder %s92, %s94
      %p98 = scmp.eq.s32.totalorder %s18, 0
      %p99 = por %p97, %p98
      %p100 = scmp.ne.s32.totalorder %s92, %s94
      %p101 = scmp.eq.s32.totalorder %s23, 1
      %p102 = por %p100, %p101
      %p103 = scmp.ne.s32.totalorder %s94, %s95
      %p104 = scmp.eq.s32.totalorder %s23, 0
      %p105 = por %p103, %p104
      %p106 = scmp.ne.s32.totalorder %s94, %s95
      %p107 = scmp.eq.s32.totalorder %s24, 1
      %p108 = por %p106, %p107
      %p110 = scmp.ne.s32.totalorder %s95, %s109
      %p111 = scmp.eq.s32.totalorder %s24, 0
      %p112 = por %p110, %p111
      %s114 = sadd.s32 %s113, 1
      %p117 = scmp.eq.s32.totalorder %s18, 1
      %p118 = scmp.ne.s32.totalorder %s113, %s115
      %p119 = scmp.eq.s32.totalorder %s18, 0
      %p120 = por %p118, %p119
      %p121 = scmp.ne.s32.totalorder %s113, %s115
      %p122 = scmp.eq.s32.totalorder %s23, 1
      %p123 = por %p121, %p122
      %p124 = scmp.ne.s32.totalorder %s115, %s116
      %p125 = scmp.eq.s32.totalorder %s23, 0
      %p126 = por %p124, %p125
      %p127 = scmp.ne.s32.totalorder %s115, %s116
      %p128 = scmp.eq.s32.totalorder %s24, 1
      %p129 = por %p127, %p128
      %p131 = scmp.ne.s32.totalorder %s116, %s130
      %p132 = scmp.eq.s32.totalorder %s24, 0
      %p133 = por %p131, %p132
      %s134 = ssub.s32 %s25, %s37
      %p135 = scmp.eq.s32.totalorder %s134, 0
      %s137 = sadd.s32 %s136, 1
      %s138 = scalar_select %p135, %s136, %s137
      %p141 = pneg %p135
      %p142 = scmp.eq.s32.totalorder %s18, 1
      %p143 = por %p141, %p142
      %p144 = scmp.ne.s32.totalorder %s136, %s139
      %p145 = scmp.eq.s32.totalorder %s18, 0
      %p146 = por %p144, %p145
      %p147 = scmp.ne.s32.totalorder %s136, %s139
      %p148 = scmp.eq.s32.totalorder %s23, 1
      %p149 = por %p147, %p148
      %p150 = scmp.ne.s32.totalorder %s139, %s140
      %p151 = scmp.eq.s32.totalorder %s23, 0
      %p152 = por %p150, %p151
      %p153 = scmp.ne.s32.totalorder %s139, %s140
      %p154 = scmp.eq.s32.totalorder %s24, 1
      %p155 = por %p153, %p154
      %p157 = scmp.ne.s32.totalorder %s140, %s156
      %p158 = scmp.eq.s32.totalorder %s24, 0
      %p159 = por %p157, %p158
      %p160 = scmp.le.s32.totalorder 1, %s18
      %p161 = scmp.lt.s32.totalorder %s18, 3
      %p162 = pnand %p160, %p161
      %p163 = pneg %p162
      // Predicated region
      $region9: #{tpu_custom_call.1} parent=5 // pred_check
        _
      $region10: #{tpu_custom_call.1} parent=5 // pred_check_branch
        %165 = sbr.rel (%p162) target = $region12
      $region11: #{tpu_custom_call.1} parent=5 // pred_region
        %s166 = ssub.s32 %s18, 1
        // Predicated region
        $region13: #{tpu_custom_call.1} parent=11 // pred_check
          %p167 = pneg %p84
        $region14: #{tpu_custom_call.1} parent=11 // pred_check_branch
          %169 = sbr.rel (%p167) target = $region16
        $region15: #{tpu_custom_call.1} parent=11 // pred_region
          %s170 = smul.u32 16, %s28
          %s172 = ssub.s32 2048, 2048
          %173 = vsyncadd [#allocation7], %s172
          %s174 = smul.addr %s170, 128
          %s175 = scalar_lea.hbm %s1, %s174
          %s176 = sshll.u32 [#allocation6], 4
          %s177 = int_to_ptr.vmem [resolvable:$true] %s176
          %182 = dma.hbm_to_vmem [thread:$0]  %s175, 2048, %s177, [#allocation7], 128, 128, 8
        $region16: #{tpu_custom_call.1} parent=11 // pred_fallthru
          _
        // Predicated region
        $region17: #{tpu_custom_call.1} parent=11 // pred_check
          %p183 = pneg %p105
        $region18: #{tpu_custom_call.1} parent=11 // pred_check_branch
          %185 = sbr.rel (%p183) target = $region20
        $region19: #{tpu_custom_call.1} parent=11 // pred_region
          %s187 = ssub.s32 128, 128
          %188 = vsyncadd [#allocation7], %s187
          %s190 = sshll.u32 [#allocation8], 4
          %s191 = int_to_ptr.vmem [resolvable:$true] %s190
          %193 = dma.hbm_to_vmem [thread:$0]  %s2, 128, %s191, [#allocation7]
        $region20: #{tpu_custom_call.1} parent=11 // pred_fallthru
          _
        // Predicated region
        $region21: #{tpu_custom_call.1} parent=11 // pred_check
          %p194 = pneg %p126
        $region22: #{tpu_custom_call.1} parent=11 // pred_check_branch
          %196 = sbr.rel (%p194) target = $region24
        $region23: #{tpu_custom_call.1} parent=11 // pred_region
          %s198 = ssub.s32 16, 16
          %199 = vsyncadd [#allocation5], %s198
          %s201 = sshll.u32 %s3, 4
          %s202 = int_to_ptr.vmem [resolvable:$true] %s201
          %204 = dma.vmem_to_smem %s202, 16, [#allocation9], [#allocation5]
        $region24: #{tpu_custom_call.1} parent=11 // pred_fallthru
          _
      $region12: #{tpu_custom_call.1} parent=5 // pred_fallthru
        _
      %p205 = scmp.lt.s32.totalorder %s18, 2
      // Predicated region
      $region25: #{tpu_custom_call.1} parent=5 // pred_check
        %p206 = pneg %p205
      $region26: #{tpu_custom_call.1} parent=5 // pred_check_branch
        %208 = sbr.rel (%p206) target = $region28
      $region27: #{tpu_custom_call.1} parent=5 // pred_region
        // Predicated region
        $region29: #{tpu_custom_call.1} parent=27 // pred_check
          %p209 = pneg %p52
        $region30: #{tpu_custom_call.1} parent=27 // pred_check_branch
          %211 = sbr.rel (%p209) target = $region32
        $region31: #{tpu_custom_call.1} parent=27 // pred_region
          %s212 = sand.u32 %s42, 1
          %s213 = scalar_lea.sflag [#allocation3], %s212
          %s214 = sand.u32 %s42, 1
          %s215 = smul.addr %s214, 8
          %s216 = scalar_lea.vmem [#allocation2], %s215
          %s218 = ssub.s32 128, 128
          %219 = vsyncadd %s213, %s218
          %s220 = sadd.s32 %s26, %s25
          %s221 = smul.addr %s220, 128
          %s222 = scalar_lea.hbm %s0, %s221
          %s224 = sshll.u32 %s216, 4
          %s225 = int_to_ptr.vmem [resolvable:$true] %s224
          %227 = dma.hbm_to_vmem [thread:$0]  %s222, 128, %s225, %s213
        $region32: #{tpu_custom_call.1} parent=27 // pred_fallthru
          _
      $region28: #{tpu_custom_call.1} parent=5 // pred_fallthru
        _
      %p228 = scmp.le.s32.totalorder 1, %s18
      %p229 = scmp.lt.s32.totalorder %s18, 3
      %p230 = pnand %p228, %p229
      %p231 = pneg %p230
      // Predicated region
      $region33: #{tpu_custom_call.1} parent=5 // pred_check
        _
      $region34: #{tpu_custom_call.1} parent=5 // pred_check_branch
        %233 = sbr.rel (%p230) target = $region36
      $region35: #{tpu_custom_call.1} parent=5 // pred_region
        %s234 = ssub.s32 %s18, 1
        %s235 = sand.u32 %s45, 1
        %s236 = scalar_lea.sflag [#allocation3], %s235
        %s237 = sand.u32 %s45, 1
        %s238 = smul.addr %s237, 8
        %s239 = scalar_lea.vmem [#allocation2], %s238
        // Predicated region
        $region37: #{tpu_custom_call.1} parent=35 // pred_check
          %p240 = pneg %p58
        $region38: #{tpu_custom_call.1} parent=35 // pred_check_branch
          %242 = sbr.rel (%p240) target = $region40
        $region39: #{tpu_custom_call.1} parent=35 // pred_region
          %243 = dma.done %s236, 128
        $region40: #{tpu_custom_call.1} parent=35 // pred_fallthru
          _
        // Predicated region
        $region41: #{tpu_custom_call.1} parent=35 // pred_check
          %p244 = pneg %p84
        $region42: #{tpu_custom_call.1} parent=35 // pred_check_branch
          %246 = sbr.rel (%p244) target = $region44
        $region43: #{tpu_custom_call.1} parent=35 // pred_region
          %247 = dma.done [#allocation7], 2048
        $region44: #{tpu_custom_call.1} parent=35 // pred_fallthru
          _
        // Predicated region
        $region45: #{tpu_custom_call.1} parent=35 // pred_check
          %p248 = pneg %p105
        $region46: #{tpu_custom_call.1} parent=35 // pred_check_branch
          %250 = sbr.rel (%p248) target = $region48
        $region47: #{tpu_custom_call.1} parent=35 // pred_region
          %251 = dma.done [#allocation7], 128
        $region48: #{tpu_custom_call.1} parent=35 // pred_fallthru
          _
        // Predicated region
        $region49: #{tpu_custom_call.1} parent=35 // pred_check
          %p252 = pneg %p126
        $region50: #{tpu_custom_call.1} parent=35 // pred_check_branch
          %254 = sbr.rel (%p252) target = $region52
        $region51: #{tpu_custom_call.1} parent=35 // pred_region
          %255 = dma.done [#allocation5], 16
        $region52: #{tpu_custom_call.1} parent=35 // pred_fallthru
          _
        %256 = sfence
        %s257 = sand.u32 %s45, 1
        %s258 = scalar_lea.sflag [#allocation3], %s257
        %s259 = sand.u32 %s45, 1
        %s260 = smul.addr %s259, 8
        %s261 = scalar_lea.vmem [#allocation2], %s260
        %p262 = pneg %p58
        %p263 = pneg %p55
        %p264 = pneg %p84
        %p265 = pneg %p81
        %p266 = pneg %p105
        %p267 = pneg %p102
        %p268 = pneg %p126
        %p269 = pneg %p123
        %p270 = pneg %p152
        %p271 = pneg %p149
        %s272 = sand.u32 %s139, 1
        %s273 = scalar_lea.sflag [#allocation4], %s272
        %s274 = sand.u32 %s139, 1
        %s275 = scalar_lea.vmem [#allocation10], %s274
        %s276 = smul.u32 16, %s28
        %v277 = vld [vmem:[%s239] sm:$0xff]
        %v278 = vld [vmem:[#allocation6] sm:$0xff]
        %v279 = vld [vmem:[#allocation6 + $0x8] sm:$0xff]
        %v280 = vld [vmem:[#allocation6 + $0x10] sm:$0xff]
        %v281 = vld [vmem:[#allocation6 + $0x18] sm:$0xff]
        %v282 = vld [vmem:[#allocation6 + $0x20] sm:$0xff]
        %v283 = vld [vmem:[#allocation6 + $0x28] sm:$0xff]
        %v284 = vld [vmem:[#allocation6 + $0x30] sm:$0xff]
        %v285 = vld [vmem:[#allocation6 + $0x38] sm:$0xff]
        %v286 = vld [vmem:[#allocation6 + $0x40] sm:$0xff]
        %v287 = vld [vmem:[#allocation6 + $0x48] sm:$0xff]
        %v288 = vld [vmem:[#allocation6 + $0x50] sm:$0xff]
        %v289 = vld [vmem:[#allocation6 + $0x58] sm:$0xff]
        %v290 = vld [vmem:[#allocation6 + $0x60] sm:$0xff]
        %v291 = vld [vmem:[#allocation6 + $0x68] sm:$0xff]
        %v292 = vld [vmem:[#allocation6 + $0x70] sm:$0xff]
        %v293 = vld [vmem:[#allocation6 + $0x78] sm:$0xff]
        %v294 = vld [vmem:[#allocation8] sm:$0x1]
        %v295 = vld [vmem:[#allocation8 + $0x1] sm:$0x1]
        %v296 = vlaneseq
        %v297 = vshrl.u32 %v296, 7
        %v298 = vsub.s32 0, %v297
        %v299 = vrot.slane %v294, %v298
        %300 = vmatprep.subr.mxu0 0.0
        %301 = vmatpush1.msra.mxu0 %v278
        %302 = vmatprep.subr.mxu0 0.0
        %303 = vmatpush1.msra.mxu0 %v279
        %304 = vmatprep.subr.mxu0 0.0
        %305 = vmatpush1.msra.mxu0 %v280
        %306 = vmatprep.subr.mxu0 0.0
        %307 = vmatpush1.msra.mxu0 %v281
        %308 = vmatprep.subr.mxu0 0.0
        %309 = vmatpush1.msra.mxu0 %v282
        %310 = vmatprep.subr.mxu0 0.0
        %311 = vmatpush1.msra.mxu0 %v283
        %312 = vmatprep.subr.mxu0 0.0
        %313 = vmatpush1.msra.mxu0 %v284
        %314 = vmatprep.subr.mxu0 0.0
        %315 = vmatpush1.msra.mxu0 %v285
        %316 = vmatprep.subr.mxu0 0.0
        %317 = vmatpush1.msra.mxu0 %v286
        %318 = vmatprep.subr.mxu0 0.0
        %319 = vmatpush1.msra.mxu0 %v287
        %320 = vmatprep.subr.mxu0 0.0
        %321 = vmatpush1.msra.mxu0 %v288
        %322 = vmatprep.subr.mxu0 0.0
        %323 = vmatpush1.msra.mxu0 %v289
        %324 = vmatprep.subr.mxu0 0.0
        %325 = vmatpush1.msra.mxu0 %v290
        %326 = vmatprep.subr.mxu0 0.0
        %327 = vmatpush1.msra.mxu0 %v291
        %328 = vmatprep.subr.mxu0 0.0
        %329 = vmatpush1.msra.mxu0 %v292
        %330 = vmatprep.subr.mxu0 0.0
        %331 = vmatpush1.msra.mxu0 %v293
        %332 = vmatprep.subr.mxu0 0.0
        %333 = vmatpush1.msra.mxu0 0.0
        %334 = vmatprep.subr.mxu0 0.0
        %335 = vmatpush1.msra.mxu0 0.0
        %336 = vmatprep.subr.mxu0 0.0
        %337 = vmatpush1.msra.mxu0 0.0
        %338 = vmatprep.subr.mxu0 0.0
        %339 = vmatpush1.msra.mxu0 0.0
        %340 = vmatprep.subr.mxu0 0.0
        %341 = vmatpush1.msra.mxu0 0.0
        %342 = vmatprep.subr.mxu0 0.0
        %343 = vmatpush1.msra.mxu0 0.0
        %344 = vmatprep.subr.mxu0 0.0
        %345 = vmatpush1.msra.mxu0 0.0
        %346 = vmatprep.subr.mxu0 0.0
        %347 = vmatpush1.msra.mxu0 0.0
        %348 = vmatprep.subr.mxu0 0.0
        %349 = vmatpush1.msra.mxu0 0.0
        %350 = vmatprep.subr.mxu0 0.0
        %351 = vmatpush1.msra.mxu0 0.0
        %352 = vmatprep.subr.mxu0 0.0
        %353 = vmatpush1.msra.mxu0 0.0
        %354 = vmatprep.subr.mxu0 0.0
        %355 = vmatpush1.msra.mxu0 0.0
        %356 = vmatprep.subr.mxu0 0.0
        %357 = vmatpush1.msra.mxu0 0.0
        %358 = vmatprep.subr.mxu0 0.0
        %359 = vmatpush1.msra.mxu0 0.0
        %360 = vmatprep.subr.mxu0 0.0
        %361 = vmatpush1.msra.mxu0 0.0
        %362 = vmatprep.subr.mxu0 0.0
        %363 = vmatpush1.msra.mxu0 0.0
        %364 = vmatprep.mubr.f32.mxu0 0.0
        %365 = vmatmul.mubr.f32.gmra.mrb[0].mxu0 %v277
        %v366 = vpop.f32.mrb[0].mxu0
        %v367 = vadd.f32 %v299, %v366
        %v368 = vpop.f32.mrb[0].mxu0
        %369 = vdwg.mxu0
        %v370 = vmax.f32 %v367, 0.0
        %371 = vadd.xlane.f32.xlu0 %v370
        %v372 = vpop.xlane.xlu0 %371
        %v373 = vmul.f32 %v370, %v370
        %374 = vadd.xlane.f32.xlu0 %v373
        %v375 = vpop.xlane.xlu0 %374
        %v376 = vlaneseq
        %v377 = vshrl.u32 %v376, 7
        %v378 = vsub.s32 0, %v377
        %v379 = vrot.slane %v295, %v378
        %v380 = vmul.f32 %v370, %v379
        %381 = vadd.xlane.f32.xlu0 %v380
        %v382 = vpop.xlane.xlu0 %381
        %v383 = vmul.f32 %v372, 0.03125
        %v384 = vmul.f32 %v375, 0.03125
        %v385 = vmul.f32 %v383, %v383
        %v386 = vsub.f32 %v384, %v385
        %v387 = vmax.f32 %v386, 0.0
        %v388 = vadd.f32 %v387, 1e-12
        %v389 = vrsqrt.pop %v388
        %s390 = sld [smem:[#allocation9]]
        %v391 = vstv %s390
        %v392 = vmul.f32 %v383, %v391
        %v393 = vsub.f32 %v382, %v392
        %v394 = vmul.f32 %v389, %v393
        %s395 = sld [smem:[#allocation9 + $0x1]]
        %v396 = vstv %s395
        %v397 = vadd.f32 %v394, %v396
        %v399 = vlaneseq
        %v400 = vand.u32 %v399, 127
        %v401 = vlaneseq
        %v402 = vshrl.u32 %v401, 7
        %v403 = vsub.s32 %v400, %v402
        %v404 = vrot.slane %v397, %v403
        %vm406 = vcmask 57344
        %407 = vst.msk [vmem:[%s275] sm:$0x1] %vm406, %v404
        %s408 = sand.u32 %s139, 1
        %s409 = scalar_lea.sflag [#allocation4], %s408
        %s410 = sand.u32 %s139, 1
        %s411 = scalar_lea.vmem [#allocation10], %s410
        // Predicated region
        $region53: #{tpu_custom_call.1} parent=35 // pred_check
          %p412 = pneg %p149
        $region54: #{tpu_custom_call.1} parent=35 // pred_check_branch
          %414 = sbr.rel (%p412) target = $region56
        $region55: #{tpu_custom_call.1} parent=35 // pred_region
          %s416 = ssub.s32 16, 16
          %417 = vsyncadd %s409, %s416
          %s418 = smul.addr %s27, 16
          %s419 = scalar_lea.hbm %s4, %s418
          %s421 = sshll.u32 %s411, 4
          %s422 = int_to_ptr.vmem [resolvable:$true] %s421
          %424 = dma.vmem_to_hbm [thread:$0]  %s422, 16, %s419, %s409
        $region56: #{tpu_custom_call.1} parent=35 // pred_fallthru
          _
      $region36: #{tpu_custom_call.1} parent=5 // pred_fallthru
        _
      %p425 = scmp.le.s32.totalorder 2, %s18
      // Predicated region
      $region57: #{tpu_custom_call.1} parent=5 // pred_check
        %p426 = pneg %p425
      $region58: #{tpu_custom_call.1} parent=5 // pred_check_branch
        %428 = sbr.rel (%p426) target = $region60
      $region59: #{tpu_custom_call.1} parent=5 // pred_region
        %s429 = ssub.s32 %s18, 2
        // Predicated region
        $region61: #{tpu_custom_call.1} parent=59 // pred_check
          %p430 = pneg %p155
        $region62: #{tpu_custom_call.1} parent=59 // pred_check_branch
          %432 = sbr.rel (%p430) target = $region64
        $region63: #{tpu_custom_call.1} parent=59 // pred_region
          %s433 = sand.u32 %s140, 1
          %s434 = scalar_lea.sflag [#allocation4], %s433
          %s435 = sand.u32 %s140, 1
          %s436 = scalar_lea.vmem [#allocation10], %s435
          %437 = dma.done %s434, 16
        $region64: #{tpu_custom_call.1} parent=59 // pred_fallthru
          _
      $region60: #{tpu_custom_call.1} parent=5 // pred_fallthru
        _
    $region6: #{tpu_custom_call.1} parent=1 // loop_footer
      %s22 = sadd.s32 1, %s18
    $region7: #{tpu_custom_call.1} parent=1 // loop_footer_branch
      %17 = sbr.rel target = $region3
    $region8: #{tpu_custom_call.1} parent=1 // loop_exit
      _
    %438 = vsyncpa [#allocation3], 1
    %s439 = scalar_lea.sflag [#allocation3], 1
    %440 = vsyncpa %s439, 1
    %441 = vsyncpa [#allocation7], 1
    %442 = vsyncpa [#allocation4], 1
    %s443 = scalar_lea.sflag [#allocation4], 1
    %444 = vsyncpa %s443, 1
    %445 = vsyncpa [#allocation5], 1
    %s446 = scalar_lea.sflag [#allocation5], 1
    %447 = vsyncpa %s446, 1

</llo_original>
